<compile_context>
chip_gen: v7x
topology: tpu7x:2x2x1
jax: 0.10.0
libtpu: 0.0.40
codegen_flags: <defaults>
</compile_context>

<pallas_src>
import jax
import jax.numpy as jnp
from jax.experimental import pallas as pl
from jax.experimental.pallas import tpu as pltpu


def _proj_block_kernel(x1_ref, x2_ref, w1_ref, w2_ref, b_ref, o_ref):
    # x1_ref, x2_ref: (Nb, Cin, ts)  spatial tile (lanes) of Nb batch elements
    # w1_ref, w2_ref: (Cout, Cin)    halves of the fused 1x1-conv weight
    # b_ref:          (Cout, 1)      f32 bias
    # o_ref:          (Nb, Cout, ts) spatial on lanes -> lane-dense stores
    nb = x1_ref.shape[0]
    w1 = w1_ref[...]
    w2 = w2_ref[...]
    bias = b_ref[...]                      # (Cout, 1), broadcasts over lanes
    for b in range(nb):                    # static, unrolled (Nb is small)
        acc = jnp.dot(w1, x1_ref[b], preferred_element_type=jnp.float32)
        acc = acc + jnp.dot(w2, x2_ref[b], preferred_element_type=jnp.float32)
        o_ref[b] = (acc + bias).astype(o_ref.dtype)


def _round_up(x, m):
    return ((x + m - 1) // m) * m


def _choose_tiles(N, Cin, Cout, S, in_bytes, out_bytes, vmem_budget):
    """Pick (Nb, ts): a lane-dense spatial tile (multiple of 128) and a batch
    block, sized so the double-buffered working set fits `vmem_budget`."""
    s_pad = _round_up(S, 128)

    def working_set(nb, ts):
        x_blocks = 2 * 2 * nb * Cin * ts * in_bytes     # x1 + x2, double-buffered
        o_blocks = 2 * nb * Cout * ts * out_bytes       # output, double-buffered
        acc_tmp = nb * Cout * ts * 4                    # f32 accumulator temp
        weights = 2 * 2 * Cout * Cin * in_bytes + 2 * Cout * 4
        return x_blocks + o_blocks + acc_tmp + weights

    # Largest lane tile (<= 4096, multiple of 128) fitting the budget.
    ts = 128
    for cand in (256, 512, 1024, 2048, 4096):
        if working_set(1, cand) <= vmem_budget:
            ts = cand
    ts = min(ts, s_pad)            # don't over-allocate when S is small
    ts = _round_up(ts, 128)

    # Few spatial tiles per batch element -> pack batch elements per step to
    # amortize per-step overhead and lengthen each DMA burst.
    nb = 1
    if pl.cdiv(S, ts) <= 2:
        target = max(1, 2048 // ts)
        while nb < min(N, target) and working_set(nb * 2, ts) <= vmem_budget:
            nb *= 2
        nb = min(nb, N)
    return nb, ts, working_set(nb, ts)


def proj_block(x1, x2, weight, bias, *, compute_dtype=jnp.bfloat16,
               vmem_budget_bytes=24 * 1024 * 1024):
    """x1, x2: (N, Cin, H, W).  weight: (Cout, 2*Cin, 1, 1).  bias: (Cout,).

    Equivalent to Conv2d(2*Cin, Cout, kernel_size=1)(concat([x1, x2], dim=1)).
    Returns (N, Cout, H, W) in x1.dtype.  `compute_dtype` controls the
    streamed activation/weight precision (accumulation is always f32).
    """
    N, Cin, H, W = x1.shape
    Cout = weight.shape[0]
    assert x2.shape == x1.shape
    assert weight.shape == (Cout, 2 * Cin, 1, 1)
    assert bias.shape == (Cout,)

    out_dtype = x1.dtype
    S = H * W

    # Free reshapes (contiguous last-dim merge): NCHW -> (N, Cin, H*W).
    x1r = x1.reshape(N, Cin, S)
    x2r = x2.reshape(N, Cin, S)

    # Fuse the channel concat into a weight split:
    # cat([x1, x2], C) @ W  ==  W[:, :Cin] @ x1 + W[:, Cin:] @ x2
    w = weight[:, :, 0, 0]               # (Cout, 2*Cin)
    w1 = w[:, :Cin]
    w2 = w[:, Cin:]
    b2d = bias.reshape(Cout, 1).astype(jnp.float32)

    # Stream activations/weights in bf16 (MXU-native); keep f32 accumulation.
    # In a real model the producer would already emit bf16 so the cast fuses.
    if compute_dtype is not None:
        x1r = x1r.astype(compute_dtype)
        x2r = x2r.astype(compute_dtype)
        w1 = w1.astype(compute_dtype)
        w2 = w2.astype(compute_dtype)

    in_bytes = jnp.dtype(x1r.dtype).itemsize
    out_bytes = jnp.dtype(out_dtype).itemsize
    nb, ts, ws = _choose_tiles(N, Cin, Cout, S, in_bytes, out_bytes,
                               vmem_budget_bytes)

    grid = (pl.cdiv(N, nb), pl.cdiv(S, ts))   # ragged tails are masked

    # Explicit scoped-VMEM limit (default scoped limit is 16 MiB on v5e and
    # 32 MiB on v6e/v7x); capped at 48 MiB so it is valid on v7x's 64 MiB too.
    vmem_limit = int(min(48 * 1024 * 1024, max(32 * 1024 * 1024, 1.5 * ws)))

    out = pl.pallas_call(
        _proj_block_kernel,
        out_shape=jax.ShapeDtypeStruct((N, Cout, S), out_dtype),
        grid_spec=pl.GridSpec(
            grid=grid,
            in_specs=[
                pl.BlockSpec((nb, Cin, ts), lambda n, s: (n, 0, s)),
                pl.BlockSpec((nb, Cin, ts), lambda n, s: (n, 0, s)),
                pl.BlockSpec((Cout, Cin), lambda n, s: (0, 0)),
                pl.BlockSpec((Cout, Cin), lambda n, s: (0, 0)),
                pl.BlockSpec((Cout, 1), lambda n, s: (0, 0)),
            ],
            out_specs=pl.BlockSpec((nb, Cout, ts), lambda n, s: (n, 0, s)),
        ),
        compiler_params=pltpu.CompilerParams(
            dimension_semantics=("parallel", "parallel"),
            vmem_limit_bytes=vmem_limit,
        ),
    )(x1r, x2r, w1, w2, b2d)

    # Free reshape back: (N, Cout, H*W) -> (N, Cout, H, W).
    return out.reshape(N, Cout, H, W)


if __name__ == "__main__":
    key = jax.random.PRNGKey(0)
    k1, k2, kw, kb = jax.random.split(key, 4)

    N, Cin, H, W = 2, 4, 16, 16
    Cout = 8

    x1 = jax.random.normal(k1, (N, Cin, H, W), dtype=jnp.float32)
    x2 = jax.random.normal(k2, (N, Cin, H, W), dtype=jnp.float32)

    # Conv2d(2*Cin, Cout, kernel_size=1)-shaped synthetic parameters.
    fan_in = 2 * Cin
    bound = 1.0 / (fan_in ** 0.5)
    weight = jax.random.uniform(kw, (Cout, 2 * Cin, 1, 1),
                                minval=-bound, maxval=bound, dtype=jnp.float32)
    bias = jax.random.uniform(kb, (Cout,), minval=-bound, maxval=bound,
                              dtype=jnp.float32)

    # Reference: concat + 1x1 conv == per-pixel channel matmul.
    xcat = jnp.concatenate([x1, x2], axis=1)                      # (N, 2Cin, H, W)
    ref = jnp.einsum("nchw,oc->nohw", xcat, weight[:, :, 0, 0]) \
          + bias.reshape(1, Cout, 1, 1)

    # Default (bf16-streamed) path: loose tolerance from bf16 input rounding.
    out = jax.block_until_ready(proj_block(x1, x2, weight, bias))
    assert out.shape == (N, Cout, H, W)
    assert out.dtype == x1.dtype
    assert jnp.allclose(out, ref, atol=5e-2, rtol=5e-2)

    # Exact f32 path: tight tolerance.
    out_f32 = jax.block_until_ready(
        proj_block(x1, x2, weight, bias, compute_dtype=None))
    assert jnp.allclose(out_f32, ref, atol=1e-5, rtol=1e-5)

    print("KERNEL_OK")
</pallas_src>

<mosaic_0001>
module attributes {stable_mosaic.version = 11 : i64} {
  func.func @_proj_block_kernel(%arg0: i32, %arg1: i32, %arg2: memref<2x4x256xbf16, #tpu.memory_space<vmem>>, %arg3: memref<2x4x256xbf16, #tpu.memory_space<vmem>>, %arg4: memref<8x4xbf16, #tpu.memory_space<vmem>>, %arg5: memref<8x4xbf16, #tpu.memory_space<vmem>>, %arg6: memref<8x1xf32, #tpu.memory_space<vmem>>, %arg7: memref<2x8x256xf32, #tpu.memory_space<vmem>>) attributes {dimension_semantics = [#tpu.dimension_semantics<parallel>, #tpu.dimension_semantics<parallel>], iteration_bounds = array<i64: 1, 1>, scalar_prefetch = 0 : i64, scratch_operands = 0 : i64, tpu.core_type = #tpu.core_type<tc>, window_params = [{transform_indices = @transform_0, window_bounds = array<i64: 2, 4, 256>}, {transform_indices = @transform_1, window_bounds = array<i64: 2, 4, 256>}, {pipeline_mode = #tpu.pipeline_mode<synchronous>, transform_indices = @transform_2, window_bounds = array<i64: 8, 4>}, {pipeline_mode = #tpu.pipeline_mode<synchronous>, transform_indices = @transform_3, window_bounds = array<i64: 8, 4>}, {pipeline_mode = #tpu.pipeline_mode<synchronous>, transform_indices = @transform_4, window_bounds = array<i64: 8, 1>}, {transform_indices = @transform_5, window_bounds = array<i64: 2, 8, 256>}]} {
    %c0 = arith.constant 0 : index
    %c0_0 = arith.constant 0 : index
    %0 = vector.load %arg4[%c0, %c0_0] : memref<8x4xbf16, #tpu.memory_space<vmem>>, vector<8x4xbf16>
    %c0_1 = arith.constant 0 : index
    %c0_2 = arith.constant 0 : index
    %1 = vector.load %arg5[%c0_1, %c0_2] : memref<8x4xbf16, #tpu.memory_space<vmem>>, vector<8x4xbf16>
    %c0_3 = arith.constant 0 : index
    %c0_4 = arith.constant 0 : index
    %2 = vector.load %arg6[%c0_3, %c0_4] : memref<8x1xf32, #tpu.memory_space<vmem>>, vector<8x1xf32>
    %c0_5 = arith.constant 0 : index
    %c0_6 = arith.constant 0 : index
    %c0_7 = arith.constant 0 : index
    %3 = vector.load %arg2[%c0_5, %c0_6, %c0_7] : memref<2x4x256xbf16, #tpu.memory_space<vmem>>, vector<1x4x256xbf16>
    %4 = vector.shape_cast %3 : vector<1x4x256xbf16> to vector<4x256xbf16>
    %cst = arith.constant dense<0.000000e+00> : vector<8x256xf32>
    %5 = tpu.matmul %0, %4, %cst {dimension_numbers = #tpu.dot_dimension_numbers<[1], [0], [0], [1], [0, 0, 1, 1], [], []>} : vector<8x4xbf16>, vector<4x256xbf16>, vector<8x256xf32> -> vector<8x256xf32>
    %c0_8 = arith.constant 0 : index
    %c0_9 = arith.constant 0 : index
    %c0_10 = arith.constant 0 : index
    %6 = vector.load %arg3[%c0_8, %c0_9, %c0_10] : memref<2x4x256xbf16, #tpu.memory_space<vmem>>, vector<1x4x256xbf16>
    %7 = vector.shape_cast %6 : vector<1x4x256xbf16> to vector<4x256xbf16>
    %cst_11 = arith.constant dense<0.000000e+00> : vector<8x256xf32>
    %8 = tpu.matmul %1, %7, %cst_11 {dimension_numbers = #tpu.dot_dimension_numbers<[1], [0], [0], [1], [0, 0, 1, 1], [], []>} : vector<8x4xbf16>, vector<4x256xbf16>, vector<8x256xf32> -> vector<8x256xf32>
    %9 = arith.addf %5, %8 : vector<8x256xf32>
    %10 = vector.broadcast %2 : vector<8x1xf32> to vector<8x256xf32>
    %11 = arith.addf %9, %10 : vector<8x256xf32>
    %c0_12 = arith.constant 0 : index
    %c0_13 = arith.constant 0 : index
    %c0_14 = arith.constant 0 : index
    %12 = vector.load %arg7[%c0_12, %c0_13, %c0_14] : memref<2x8x256xf32, #tpu.memory_space<vmem>>, vector<1x8x256xf32>
    %13 = vector.shape_cast %12 : vector<1x8x256xf32> to vector<8x256xf32>
    %14 = vector.shape_cast %11 : vector<8x256xf32> to vector<1x8x256xf32>
    tpu.vector_store %arg7[%c0_12, %c0_13, %c0_14], %14 {strides = array<i32>} : memref<2x8x256xf32, #tpu.memory_space<vmem>>, vector<1x8x256xf32>,
    %c1 = arith.constant 1 : index
    %c0_15 = arith.constant 0 : index
    %c0_16 = arith.constant 0 : index
    %15 = vector.load %arg2[%c1, %c0_15, %c0_16] : memref<2x4x256xbf16, #tpu.memory_space<vmem>>, vector<1x4x256xbf16>
    %16 = vector.shape_cast %15 : vector<1x4x256xbf16> to vector<4x256xbf16>
    %cst_17 = arith.constant dense<0.000000e+00> : vector<8x256xf32>
    %17 = tpu.matmul %0, %16, %cst_17 {dimension_numbers = #tpu.dot_dimension_numbers<[1], [0], [0], [1], [0, 0, 1, 1], [], []>} : vector<8x4xbf16>, vector<4x256xbf16>, vector<8x256xf32> -> vector<8x256xf32>
    %c1_18 = arith.constant 1 : index
    %c0_19 = arith.constant 0 : index
    %c0_20 = arith.constant 0 : index
    %18 = vector.load %arg3[%c1_18, %c0_19, %c0_20] : memref<2x4x256xbf16, #tpu.memory_space<vmem>>, vector<1x4x256xbf16>
    %19 = vector.shape_cast %18 : vector<1x4x256xbf16> to vector<4x256xbf16>
    %cst_21 = arith.constant dense<0.000000e+00> : vector<8x256xf32>
    %20 = tpu.matmul %1, %19, %cst_21 {dimension_numbers = #tpu.dot_dimension_numbers<[1], [0], [0], [1], [0, 0, 1, 1], [], []>} : vector<8x4xbf16>, vector<4x256xbf16>, vector<8x256xf32> -> vector<8x256xf32>
    %21 = arith.addf %17, %20 : vector<8x256xf32>
    %22 = vector.broadcast %2 : vector<8x1xf32> to vector<8x256xf32>
    %23 = arith.addf %21, %22 : vector<8x256xf32>
    %c1_22 = arith.constant 1 : index
    %c0_23 = arith.constant 0 : index
    %c0_24 = arith.constant 0 : index
    %24 = vector.load %arg7[%c1_22, %c0_23, %c0_24] : memref<2x8x256xf32, #tpu.memory_space<vmem>>, vector<1x8x256xf32>
    %25 = vector.shape_cast %24 : vector<1x8x256xf32> to vector<8x256xf32>
    %26 = vector.shape_cast %23 : vector<8x256xf32> to vector<1x8x256xf32>
    tpu.vector_store %arg7[%c1_22, %c0_23, %c0_24], %26 {strides = array<i32>} : memref<2x8x256xf32, #tpu.memory_space<vmem>>, vector<1x8x256xf32>,
    return
  }
  func.func @transform_0(%arg0: i32, %arg1: i32) -> (i32, i32, i32) {
    %c0_i32 = arith.constant 0 : i32
    %c0_i32_0 = arith.constant 0 : i32
    return %arg0, %c0_i32, %arg1 : i32, i32, i32
  }
  func.func @transform_1(%arg0: i32, %arg1: i32) -> (i32, i32, i32) {
    %c0_i32 = arith.constant 0 : i32
    %c0_i32_0 = arith.constant 0 : i32
    return %arg0, %c0_i32, %arg1 : i32, i32, i32
  }
  func.func @transform_2(%arg0: i32, %arg1: i32) -> (i32, i32) {
    %c0_i32 = arith.constant 0 : i32
    %c0_i32_0 = arith.constant 0 : i32
    %c0_i32_1 = arith.constant 0 : i32
    return %c0_i32, %c0_i32_0 : i32, i32
  }
  func.func @transform_3(%arg0: i32, %arg1: i32) -> (i32, i32) {
    %c0_i32 = arith.constant 0 : i32
    %c0_i32_0 = arith.constant 0 : i32
    %c0_i32_1 = arith.constant 0 : i32
    return %c0_i32, %c0_i32_0 : i32, i32
  }
  func.func @transform_4(%arg0: i32, %arg1: i32) -> (i32, i32) {
    %c0_i32 = arith.constant 0 : i32
    %c0_i32_0 = arith.constant 0 : i32
    %c0_i32_1 = arith.constant 0 : i32
    return %c0_i32, %c0_i32_0 : i32, i32
  }
  func.func @transform_5(%arg0: i32, %arg1: i32) -> (i32, i32, i32) {
    %c0_i32 = arith.constant 0 : i32
    %c0_i32_0 = arith.constant 0 : i32
    return %arg0, %c0_i32, %arg1 : i32, i32, i32
  }
}

</mosaic_0001>

<llo_original>
// kernel: tpu_custom_call.1
$region0: #{tpu_custom_call.1}
  #allocation0 [shape = 'u32[]', space=smem, size = 0x4, offset = 0x4, fixed_abs, tag = 'smem constant byte address 0x4 - core index']
  #allocation1 [shape = 'u32[144,128]{1,0:T(1,128)}', space=vmem, size = 0x12000, scoped, tag = 'internal scratch']
  %s0 = inlined_call_operand.vmem [shape: bf16[2,4,256], index: 0, kind: input, shape index: {}]
  %s1 = inlined_call_operand.vmem [shape: bf16[2,4,256], index: 1, kind: input, shape index: {}]
  %s2 = inlined_call_operand.vmem [shape: bf16[8,4], index: 2, kind: input, shape index: {}]
  %s3 = inlined_call_operand.vmem [shape: bf16[8,4], index: 3, kind: input, shape index: {}]
  %s4 = inlined_call_operand.vmem [shape: f32[8,1], index: 4, kind: input, shape index: {}]
  %s5 = inlined_call_operand.hbm [shape: f32[2,8,256], index: 5, kind: output, shape index: {}]
  %s6 = sld [smem:[#allocation0]]
  $region30: #{tpu_custom_call.1} parent=0
    _
  %s8 = ssub.s32 1, %s6
  %s9 = scalar_select 0, %s8, %s6
  $region1: #{tpu_custom_call.1} parent=0
    #allocation2 [shape = 'u8[16384]{0}', space=vmem, size = 0x4000, scoped, tag = 'output window, operand 0, single buffered']
    #allocation3 [shape = 's32[1]{0}', space=sflag, size = 0x4, scoped, tag = 'scoped memory for tpu_custom_call.1']
    %10 = vsyncpa [#allocation3], 0
    // Predicated region
    $region2: #{tpu_custom_call.1} parent=1 // pred_check
      _
    $region3: #{tpu_custom_call.1} parent=1 // pred_check_branch
      %12 = sbr.rel (0) target = $region5
    $region4: #{tpu_custom_call.1} parent=1 // pred_region
      _
    $region5: #{tpu_custom_call.1} parent=1 // pred_fallthru
      _
    // Predicated region
    $region6: #{tpu_custom_call.1} parent=1 // pred_check
      _
    $region7: #{tpu_custom_call.1} parent=1 // pred_check_branch
      %14 = sbr.rel (0) target = $region9
    $region8: #{tpu_custom_call.1} parent=1 // pred_region
      _
    $region9: #{tpu_custom_call.1} parent=1 // pred_fallthru
      _
    // Predicated region
    $region10: #{tpu_custom_call.1} parent=1 // pred_check
      _
    $region11: #{tpu_custom_call.1} parent=1 // pred_check_branch
      %16 = sbr.rel (0) target = $region13
    $region12: #{tpu_custom_call.1} parent=1 // pred_region
      _
    $region13: #{tpu_custom_call.1} parent=1 // pred_fallthru
      _
    // Predicated region
    $region14: #{tpu_custom_call.1} parent=1 // pred_check
      _
    $region15: #{tpu_custom_call.1} parent=1 // pred_check_branch
      %18 = sbr.rel (0) target = $region17
    $region16: #{tpu_custom_call.1} parent=1 // pred_region
      _
    $region17: #{tpu_custom_call.1} parent=1 // pred_fallthru
      _
    // Predicated region
    $region18: #{tpu_custom_call.1} parent=1 // pred_check
      _
    $region19: #{tpu_custom_call.1} parent=1 // pred_check_branch
      %20 = sbr.rel (0) target = $region21
    $region20: #{tpu_custom_call.1} parent=1 // pred_region
      _
    $region21: #{tpu_custom_call.1} parent=1 // pred_fallthru
      _
    %v22 = vld [vmem:[%s2] sm:$0xf]
    %v23 = vld [vmem:[%s3] sm:$0xf]
    %v24 = vld [vmem:[%s4] sm:$0xff]
    %v25 = vld [vmem:[%s0] sm:$0xf]
    %v26 = vld [vmem:[%s1] sm:$0xf]
    %v29 = vunpack.c.l.s4 1983009808
    %v30 = vunpack.c.0.s8 %v29
    %v31 = vlaneseq
    %v32 = vshrl.u32 %v31, 7
    %v33 = vsub.s32 %v30, %v32
    %v34 = vrot.slane %v26, %v33
    %v35 = vcombine.high %v34, %v34
    %vm36 = vcmask 31744
    %v38 = vsel %vm36, %v23, 0
    %vm40 = vcmask 1041408
    %v42 = vsel %vm40, %v34, 0
    %v45 = vsel %vm40, %v35, 0
    %47 = vmatprep.subr.bf16.mxu0 %v45
    %48 = vmatpush1.bf16.msra.mxu0 %v42
    %49 = vmatprep.subr.bf16.mxu0 0
    %50 = vmatpush1.bf16.msra.mxu0 0
    %51 = vmatprep.subr.bf16.mxu0 0
    %52 = vmatpush1.bf16.msra.mxu0 0
    %53 = vmatprep.subr.bf16.mxu0 0
    %54 = vmatpush1.bf16.msra.mxu0 0
    %55 = vmatprep.subr.bf16.mxu0 0
    %56 = vmatpush1.bf16.msra.mxu0 0
    %57 = vmatprep.subr.bf16.mxu0 0
    %58 = vmatpush1.bf16.msra.mxu0 0
    %59 = vmatprep.subr.bf16.mxu0 0
    %60 = vmatpush1.bf16.msra.mxu0 0
    %61 = vmatprep.subr.bf16.mxu0 0
    %62 = vmatpush1.bf16.msra.mxu0 0
    %63 = vmatprep.subr.bf16.mxu0 0
    %64 = vmatpush1.bf16.msra.mxu0 0
    %65 = vmatprep.subr.bf16.mxu0 0
    %66 = vmatpush1.bf16.msra.mxu0 0
    %67 = vmatprep.subr.bf16.mxu0 0
    %68 = vmatpush1.bf16.msra.mxu0 0
    %69 = vmatprep.subr.bf16.mxu0 0
    %70 = vmatpush1.bf16.msra.mxu0 0
    %71 = vmatprep.subr.bf16.mxu0 0
    %72 = vmatpush1.bf16.msra.mxu0 0
    %73 = vmatprep.subr.bf16.mxu0 0
    %74 = vmatpush1.bf16.msra.mxu0 0
    %75 = vmatprep.subr.bf16.mxu0 0
    %76 = vmatpush1.bf16.msra.mxu0 0
    %77 = vmatprep.subr.bf16.mxu0 0
    %78 = vmatpush1.bf16.msra.mxu0 0
    %79 = vmatprep.mubr.bf16.mxu0 0
    %80 = vmatmul.mubr.bf16.gmra.mrb[0].mxu0 %v38
    %v81 = vpop.f32.mrb[0].mxu0
    %v82 = vadd.f32 0.0, %v81
    %v83 = vpop.f32.mrb[0].mxu0
    %v84 = vadd.f32 0.0, %v83
    %v85 = vpop.f32.mrb[0].mxu0
    %v86 = vpop.f32.mrb[0].mxu0
    %87 = vdwg.mxu0
    %v90 = vunpack.c.l.s4 1983009808
    %v91 = vunpack.c.0.s8 %v90
    %v92 = vlaneseq
    %v93 = vshrl.u32 %v92, 7
    %v94 = vsub.s32 %v91, %v93
    %v95 = vrot.slane %v25, %v94
    %v96 = vcombine.high %v95, %v95
    %v98 = vsel %vm36, %v22, 0
    %v101 = vsel %vm40, %v95, 0
    %v104 = vsel %vm40, %v96, 0
    %106 = vmatprep.subr.bf16.mxu0 %v104
    %107 = vmatpush1.bf16.msra.mxu0 %v101
    %108 = vmatprep.subr.bf16.mxu0 0
    %109 = vmatpush1.bf16.msra.mxu0 0
    %110 = vmatprep.subr.bf16.mxu0 0
    %111 = vmatpush1.bf16.msra.mxu0 0
    %112 = vmatprep.subr.bf16.mxu0 0
    %113 = vmatpush1.bf16.msra.mxu0 0
    %114 = vmatprep.subr.bf16.mxu0 0
    %115 = vmatpush1.bf16.msra.mxu0 0
    %116 = vmatprep.subr.bf16.mxu0 0
    %117 = vmatpush1.bf16.msra.mxu0 0
    %118 = vmatprep.subr.bf16.mxu0 0
    %119 = vmatpush1.bf16.msra.mxu0 0
    %120 = vmatprep.subr.bf16.mxu0 0
    %121 = vmatpush1.bf16.msra.mxu0 0
    %122 = vmatprep.subr.bf16.mxu0 0
    %123 = vmatpush1.bf16.msra.mxu0 0
    %124 = vmatprep.subr.bf16.mxu0 0
    %125 = vmatpush1.bf16.msra.mxu0 0
    %126 = vmatprep.subr.bf16.mxu0 0
    %127 = vmatpush1.bf16.msra.mxu0 0
    %128 = vmatprep.subr.bf16.mxu0 0
    %129 = vmatpush1.bf16.msra.mxu0 0
    %130 = vmatprep.subr.bf16.mxu0 0
    %131 = vmatpush1.bf16.msra.mxu0 0
    %132 = vmatprep.subr.bf16.mxu0 0
    %133 = vmatpush1.bf16.msra.mxu0 0
    %134 = vmatprep.subr.bf16.mxu0 0
    %135 = vmatpush1.bf16.msra.mxu0 0
    %136 = vmatprep.subr.bf16.mxu0 0
    %137 = vmatpush1.bf16.msra.mxu0 0
    %138 = vmatprep.mubr.bf16.mxu0 0
    %139 = vmatmul.mubr.bf16.gmra.mrb[0].mxu0 %v98
    %v140 = vpop.f32.mrb[0].mxu0
    %v141 = vadd.f32 %v82, %v140
    %v142 = vpop.f32.mrb[0].mxu0
    %v143 = vadd.f32 %v84, %v142
    %v144 = vpop.f32.mrb[0].mxu0
    %v145 = vpop.f32.mrb[0].mxu0
    %146 = vdwg.mxu0
    %148 = vset.pattern.permute.xlu0 0
    %149 = vperm.xlu0 %148, %v24
    %v150 = vpop.permute.xlu0 %149
    %v152 = vadd.f32 %v141, %v150
    %v153 = vadd.f32 %v143, %v150
    %154 = vst [vmem:[#allocation2] sm:$0xff] %v152
    %155 = vst [vmem:[#allocation2 + $0x8] sm:$0xff] %v153
    %s156 = scalar_lea.vmem %s0, 4
    %v157 = vld [vmem:[%s156] sm:$0xf]
    %s158 = scalar_lea.vmem %s1, 4
    %v159 = vld [vmem:[%s158] sm:$0xf]
    %v162 = vunpack.c.l.s4 1983009808
    %v163 = vunpack.c.0.s8 %v162
    %v164 = vlaneseq
    %v165 = vshrl.u32 %v164, 7
    %v166 = vsub.s32 %v163, %v165
    %v167 = vrot.slane %v159, %v166
    %v168 = vcombine.high %v167, %v167
    %v170 = vsel %vm40, %v167, 0
    %v173 = vsel %vm40, %v168, 0
    %175 = vmatprep.subr.bf16.mxu0 %v173
    %176 = vmatpush1.bf16.msra.mxu0 %v170
    %177 = vmatprep.subr.bf16.mxu0 0
    %178 = vmatpush1.bf16.msra.mxu0 0
    %179 = vmatprep.subr.bf16.mxu0 0
    %180 = vmatpush1.bf16.msra.mxu0 0
    %181 = vmatprep.subr.bf16.mxu0 0
    %182 = vmatpush1.bf16.msra.mxu0 0
    %183 = vmatprep.subr.bf16.mxu0 0
    %184 = vmatpush1.bf16.msra.mxu0 0
    %185 = vmatprep.subr.bf16.mxu0 0
    %186 = vmatpush1.bf16.msra.mxu0 0
    %187 = vmatprep.subr.bf16.mxu0 0
    %188 = vmatpush1.bf16.msra.mxu0 0
    %189 = vmatprep.subr.bf16.mxu0 0
    %190 = vmatpush1.bf16.msra.mxu0 0
    %191 = vmatprep.subr.bf16.mxu0 0
    %192 = vmatpush1.bf16.msra.mxu0 0
    %193 = vmatprep.subr.bf16.mxu0 0
    %194 = vmatpush1.bf16.msra.mxu0 0
    %195 = vmatprep.subr.bf16.mxu0 0
    %196 = vmatpush1.bf16.msra.mxu0 0
    %197 = vmatprep.subr.bf16.mxu0 0
    %198 = vmatpush1.bf16.msra.mxu0 0
    %199 = vmatprep.subr.bf16.mxu0 0
    %200 = vmatpush1.bf16.msra.mxu0 0
    %201 = vmatprep.subr.bf16.mxu0 0
    %202 = vmatpush1.bf16.msra.mxu0 0
    %203 = vmatprep.subr.bf16.mxu0 0
    %204 = vmatpush1.bf16.msra.mxu0 0
    %205 = vmatprep.subr.bf16.mxu0 0
    %206 = vmatpush1.bf16.msra.mxu0 0
    %207 = vmatprep.mubr.bf16.mxu0 0
    %208 = vmatmul.mubr.bf16.gmra.mrb[0].mxu0 %v38
    %v209 = vpop.f32.mrb[0].mxu0
    %v210 = vadd.f32 0.0, %v209
    %v211 = vpop.f32.mrb[0].mxu0
    %v212 = vadd.f32 0.0, %v211
    %v213 = vpop.f32.mrb[0].mxu0
    %v214 = vpop.f32.mrb[0].mxu0
    %215 = vdwg.mxu0
    %v218 = vunpack.c.l.s4 1983009808
    %v219 = vunpack.c.0.s8 %v218
    %v220 = vlaneseq
    %v221 = vshrl.u32 %v220, 7
    %v222 = vsub.s32 %v219, %v221
    %v223 = vrot.slane %v157, %v222
    %v224 = vcombine.high %v223, %v223
    %v226 = vsel %vm40, %v223, 0
    %v229 = vsel %vm40, %v224, 0
    %231 = vmatprep.subr.bf16.mxu0 %v229
    %232 = vmatpush1.bf16.msra.mxu0 %v226
    %233 = vmatprep.subr.bf16.mxu0 0
    %234 = vmatpush1.bf16.msra.mxu0 0
    %235 = vmatprep.subr.bf16.mxu0 0
    %236 = vmatpush1.bf16.msra.mxu0 0
    %237 = vmatprep.subr.bf16.mxu0 0
    %238 = vmatpush1.bf16.msra.mxu0 0
    %239 = vmatprep.subr.bf16.mxu0 0
    %240 = vmatpush1.bf16.msra.mxu0 0
    %241 = vmatprep.subr.bf16.mxu0 0
    %242 = vmatpush1.bf16.msra.mxu0 0
    %243 = vmatprep.subr.bf16.mxu0 0
    %244 = vmatpush1.bf16.msra.mxu0 0
    %245 = vmatprep.subr.bf16.mxu0 0
    %246 = vmatpush1.bf16.msra.mxu0 0
    %247 = vmatprep.subr.bf16.mxu0 0
    %248 = vmatpush1.bf16.msra.mxu0 0
    %249 = vmatprep.subr.bf16.mxu0 0
    %250 = vmatpush1.bf16.msra.mxu0 0
    %251 = vmatprep.subr.bf16.mxu0 0
    %252 = vmatpush1.bf16.msra.mxu0 0
    %253 = vmatprep.subr.bf16.mxu0 0
    %254 = vmatpush1.bf16.msra.mxu0 0
    %255 = vmatprep.subr.bf16.mxu0 0
    %256 = vmatpush1.bf16.msra.mxu0 0
    %257 = vmatprep.subr.bf16.mxu0 0
    %258 = vmatpush1.bf16.msra.mxu0 0
    %259 = vmatprep.subr.bf16.mxu0 0
    %260 = vmatpush1.bf16.msra.mxu0 0
    %261 = vmatprep.subr.bf16.mxu0 0
    %262 = vmatpush1.bf16.msra.mxu0 0
    %263 = vmatprep.mubr.bf16.mxu0 0
    %264 = vmatmul.mubr.bf16.gmra.mrb[0].mxu0 %v98
    %v265 = vpop.f32.mrb[0].mxu0
    %v266 = vadd.f32 %v210, %v265
    %v267 = vpop.f32.mrb[0].mxu0
    %v268 = vadd.f32 %v212, %v267
    %v269 = vpop.f32.mrb[0].mxu0
    %v270 = vpop.f32.mrb[0].mxu0
    %271 = vdwg.mxu0
    %v272 = vadd.f32 %v266, %v150
    %v273 = vadd.f32 %v268, %v150
    %s274 = scalar_lea.vmem [#allocation2], 16
    %275 = vst [vmem:[%s274] sm:$0xff] %v272
    %276 = vst [vmem:[%s274 + $0x8] sm:$0xff] %v273
    // Predicated region
    $region22: #{tpu_custom_call.1} parent=1 // pred_check
      _
    $region23: #{tpu_custom_call.1} parent=1 // pred_check_branch
      %278 = sbr.rel (0) target = $region25
    $region24: #{tpu_custom_call.1} parent=1 // pred_region
      %s280 = ssub.s32 512, 512
      %281 = vsyncadd [#allocation3], %s280
      %s282 = sshll.u32 [#allocation2], 4
      %s283 = int_to_ptr.vmem [resolvable:$true] %s282
      %288 = dma.vmem_to_hbm [thread:$0]  %s283, 512, %s5, [#allocation3], 256, 256, 16
    $region25: #{tpu_custom_call.1} parent=1 // pred_fallthru
      _
    // Predicated region
    $region26: #{tpu_custom_call.1} parent=1 // pred_check
      _
    $region27: #{tpu_custom_call.1} parent=1 // pred_check_branch
      %290 = sbr.rel (0) target = $region29
    $region28: #{tpu_custom_call.1} parent=1 // pred_region
      %291 = dma.done [#allocation3], 512
    $region29: #{tpu_custom_call.1} parent=1 // pred_fallthru
      _
    %292 = vsyncpa [#allocation3], 1

</llo_original>
